<compile_context>
chip_gen: v7x
topology: tpu7x:2x2x1
jax: 0.10.0
libtpu: 0.0.40
codegen_flags: <defaults>
</compile_context>

<pallas_src>
import jax
import jax.numpy as jnp
from jax.experimental import pallas as pl
from jax.experimental.pallas import tpu as pltpu


def _outconv_kernel(x_ref, w_ref, b_ref, o_ref):
    """1x1x1 Conv3d on a (C, M)-oriented tile.

    x_ref: (1, C_in, tM)  VMEM  activation tile (spatial on the lane axis)
    w_ref: (C_out, C_in)  SMEM  weights (read as scalars, broadcast on the VPU)
    b_ref: (C_out,)       SMEM  bias
    o_ref: (1, C_out, tM) VMEM  lane-dense output tile
    """
    c_in = x_ref.shape[1]
    c_out = o_ref.shape[1]
    # Unrolled VPU FMA over the (tiny, static) channel dims; accumulate in f32.
    for co in range(c_out):
        acc = x_ref[0, 0:1, :].astype(jnp.float32) * w_ref[co, 0] + b_ref[co]
        for ci in range(1, c_in):
            acc = acc + x_ref[0, ci:ci + 1, :].astype(jnp.float32) * w_ref[co, ci]
        o_ref[0, co:co + 1, :] = acc.astype(o_ref.dtype)


def outconv_forward(x, weight, bias, *, tm=8192):
    """x: (N, C_in, D, H, W); weight: (C_out, C_in, 1, 1, 1); bias: (C_out,)."""
    N, C_in, D, H, W = x.shape
    C_out = weight.shape[0]
    M = D * H * W

    # Flatten spatial dims only (free on contiguous NCDHW); no transposes.
    x3 = x.reshape(N, C_in, M)

    # Lane tile: multiple of 128, capped at `tm`; pad M up to a tile multiple.
    tm = max(128, (tm // 128) * 128)
    tM = min(tm, pl.cdiv(M, 128) * 128)
    M_pad = pl.cdiv(M, tM) * tM
    if M_pad != M:
        x3 = jnp.pad(x3, ((0, 0), (0, 0), (0, M_pad - M)))

    # Tiny parameter tables live in SMEM; compute is done in f32.
    w2d = weight.reshape(C_out, C_in).astype(jnp.float32)
    b1d = bias.reshape(C_out).astype(jnp.float32)

    grid = (N, M_pad // tM)

    out3 = pl.pallas_call(
        _outconv_kernel,
        out_shape=jax.ShapeDtypeStruct((N, C_out, M_pad), x.dtype),
        grid_spec=pltpu.PrefetchScalarGridSpec(
            num_scalar_prefetch=0,
            grid=grid,
            in_specs=[
                pl.BlockSpec((1, C_in, tM), lambda n, m: (n, 0, m)),
                pl.BlockSpec(memory_space=pltpu.MemorySpace.SMEM),
                pl.BlockSpec(memory_space=pltpu.MemorySpace.SMEM),
            ],
            out_specs=pl.BlockSpec((1, C_out, tM), lambda n, m: (n, 0, m)),
        ),
        compiler_params=pltpu.CompilerParams(
            # Both grid axes are independent -> shard across v7x's 2 TensorCores.
            dimension_semantics=("parallel", "parallel"),
            # Explicit budget with headroom (well under v7x's 64 MiB physical).
            vmem_limit_bytes=32 * 1024 * 1024,
        ),
    )(x3, w2d, b1d)

    if M_pad != M:
        out3 = out3[:, :, :M]
    return out3.reshape(N, C_out, D, H, W)


if __name__ == "__main__":
    # Small shapes consistent with UNet3D(channel_selection=0): OutConv has
    # in_channels = channels[0] = 4, out_channels = n_classes = 3.
    # Irregular spatial dims (M = 7*8*9 = 504) exercise the padded-tail path.
    N, C_in, C_out, D, H, W = 2, 4, 3, 7, 8, 9

    key = jax.random.PRNGKey(0)
    kx, kw, kb = jax.random.split(key, 3)

    x = jax.random.normal(kx, (N, C_in, D, H, W), dtype=jnp.float32)
    # Deterministic parameter init (matches Conv3d param shapes; values synthetic).
    fan_in = C_in  # kernel_size=1 -> fan_in = C_in * 1 * 1 * 1
    bound = 1.0 / jnp.sqrt(fan_in)
    weight = jax.random.uniform(kw, (C_out, C_in, 1, 1, 1), jnp.float32, -bound, bound)
    bias = jax.random.uniform(kb, (C_out,), jnp.float32, -bound, bound)

    out = outconv_forward(x, weight, bias)
    out = jax.block_until_ready(out)

    # Reference check against plain-JAX einsum (same math as Conv3d k=1).
    ref = jnp.einsum("ncdhw,oc->nodhw", x, weight.reshape(C_out, C_in)) + \
        bias.reshape(1, C_out, 1, 1, 1)
    assert out.shape == (N, C_out, D, H, W)
    assert jnp.allclose(out, ref, atol=1e-5, rtol=1e-5)

    print("KERNEL_OK")
</pallas_src>

<mosaic_0001>
module attributes {stable_mosaic.version = 11 : i64} {
  func.func @_outconv_kernel(%arg0: i32, %arg1: i32, %arg2: memref<1x4x512xf32, #tpu.memory_space<vmem>>, %arg3: memref<3x4xf32, #tpu.memory_space<smem>>, %arg4: memref<3xf32, #tpu.memory_space<smem>>, %arg5: memref<1x3x512xf32, #tpu.memory_space<vmem>>) attributes {dimension_semantics = [#tpu.dimension_semantics<parallel>, #tpu.dimension_semantics<parallel>], iteration_bounds = array<i64: 2, 1>, scalar_prefetch = 0 : i64, scratch_operands = 0 : i64, tpu.core_type = #tpu.core_type<tc>, window_params = [{transform_indices = @transform_0, window_bounds = array<i64: 1, 4, 512>}, {transform_indices = @transform_1, window_bounds = array<i64: 3, 4>}, {transform_indices = @transform_2, window_bounds = array<i64: 3>}, {transform_indices = @transform_3, window_bounds = array<i64: 1, 3, 512>}]} {
    %c0 = arith.constant 0 : index
    %c0_0 = arith.constant 0 : index
    %c0_1 = arith.constant 0 : index
    %0 = vector.load %arg2[%c0, %c0_0, %c0_1] : memref<1x4x512xf32, #tpu.memory_space<vmem>>, vector<1x1x512xf32>
    %1 = vector.shape_cast %0 : vector<1x1x512xf32> to vector<1x512xf32>
    %c0_2 = arith.constant 0 : index
    %c0_3 = arith.constant 0 : index
    %2 = memref.load %arg3[%c0_2, %c0_3] : memref<3x4xf32, #tpu.memory_space<smem>>
    %3 = vector.broadcast %2 : f32 to vector<1x512xf32>
    %4 = arith.mulf %1, %3 : vector<1x512xf32>
    %c0_4 = arith.constant 0 : index
    %5 = memref.load %arg4[%c0_4] : memref<3xf32, #tpu.memory_space<smem>>
    %6 = vector.broadcast %5 : f32 to vector<1x512xf32>
    %7 = arith.addf %4, %6 : vector<1x512xf32>
    %c0_5 = arith.constant 0 : index
    %c1 = arith.constant 1 : index
    %c0_6 = arith.constant 0 : index
    %8 = vector.load %arg2[%c0_5, %c1, %c0_6] : memref<1x4x512xf32, #tpu.memory_space<vmem>>, vector<1x1x512xf32>
    %9 = vector.shape_cast %8 : vector<1x1x512xf32> to vector<1x512xf32>
    %c0_7 = arith.constant 0 : index
    %c1_8 = arith.constant 1 : index
    %10 = memref.load %arg3[%c0_7, %c1_8] : memref<3x4xf32, #tpu.memory_space<smem>>
    %11 = vector.broadcast %10 : f32 to vector<1x512xf32>
    %12 = arith.mulf %9, %11 : vector<1x512xf32>
    %13 = arith.addf %7, %12 : vector<1x512xf32>
    %c0_9 = arith.constant 0 : index
    %c2 = arith.constant 2 : index
    %c0_10 = arith.constant 0 : index
    %14 = vector.load %arg2[%c0_9, %c2, %c0_10] : memref<1x4x512xf32, #tpu.memory_space<vmem>>, vector<1x1x512xf32>
    %15 = vector.shape_cast %14 : vector<1x1x512xf32> to vector<1x512xf32>
    %c0_11 = arith.constant 0 : index
    %c2_12 = arith.constant 2 : index
    %16 = memref.load %arg3[%c0_11, %c2_12] : memref<3x4xf32, #tpu.memory_space<smem>>
    %17 = vector.broadcast %16 : f32 to vector<1x512xf32>
    %18 = arith.mulf %15, %17 : vector<1x512xf32>
    %19 = arith.addf %13, %18 : vector<1x512xf32>
    %c0_13 = arith.constant 0 : index
    %c3 = arith.constant 3 : index
    %c0_14 = arith.constant 0 : index
    %20 = vector.load %arg2[%c0_13, %c3, %c0_14] : memref<1x4x512xf32, #tpu.memory_space<vmem>>, vector<1x1x512xf32>
    %21 = vector.shape_cast %20 : vector<1x1x512xf32> to vector<1x512xf32>
    %c0_15 = arith.constant 0 : index
    %c3_16 = arith.constant 3 : index
    %22 = memref.load %arg3[%c0_15, %c3_16] : memref<3x4xf32, #tpu.memory_space<smem>>
    %23 = vector.broadcast %22 : f32 to vector<1x512xf32>
    %24 = arith.mulf %21, %23 : vector<1x512xf32>
    %25 = arith.addf %19, %24 : vector<1x512xf32>
    %c0_17 = arith.constant 0 : index
    %c0_18 = arith.constant 0 : index
    %c0_19 = arith.constant 0 : index
    %26 = vector.load %arg5[%c0_17, %c0_18, %c0_19] : memref<1x3x512xf32, #tpu.memory_space<vmem>>, vector<1x1x512xf32>
    %27 = vector.shape_cast %26 : vector<1x1x512xf32> to vector<1x512xf32>
    %28 = vector.shape_cast %25 : vector<1x512xf32> to vector<1x1x512xf32>
    tpu.vector_store %arg5[%c0_17, %c0_18, %c0_19], %28 {strides = array<i32>} : memref<1x3x512xf32, #tpu.memory_space<vmem>>, vector<1x1x512xf32>,
    %c0_20 = arith.constant 0 : index
    %c0_21 = arith.constant 0 : index
    %c0_22 = arith.constant 0 : index
    %29 = vector.load %arg2[%c0_20, %c0_21, %c0_22] : memref<1x4x512xf32, #tpu.memory_space<vmem>>, vector<1x1x512xf32>
    %30 = vector.shape_cast %29 : vector<1x1x512xf32> to vector<1x512xf32>
    %c1_23 = arith.constant 1 : index
    %c0_24 = arith.constant 0 : index
    %31 = memref.load %arg3[%c1_23, %c0_24] : memref<3x4xf32, #tpu.memory_space<smem>>
    %32 = vector.broadcast %31 : f32 to vector<1x512xf32>
    %33 = arith.mulf %30, %32 : vector<1x512xf32>
    %c1_25 = arith.constant 1 : index
    %34 = memref.load %arg4[%c1_25] : memref<3xf32, #tpu.memory_space<smem>>
    %35 = vector.broadcast %34 : f32 to vector<1x512xf32>
    %36 = arith.addf %33, %35 : vector<1x512xf32>
    %c0_26 = arith.constant 0 : index
    %c1_27 = arith.constant 1 : index
    %c0_28 = arith.constant 0 : index
    %37 = vector.load %arg2[%c0_26, %c1_27, %c0_28] : memref<1x4x512xf32, #tpu.memory_space<vmem>>, vector<1x1x512xf32>
    %38 = vector.shape_cast %37 : vector<1x1x512xf32> to vector<1x512xf32>
    %c1_29 = arith.constant 1 : index
    %c1_30 = arith.constant 1 : index
    %39 = memref.load %arg3[%c1_29, %c1_30] : memref<3x4xf32, #tpu.memory_space<smem>>
    %40 = vector.broadcast %39 : f32 to vector<1x512xf32>
    %41 = arith.mulf %38, %40 : vector<1x512xf32>
    %42 = arith.addf %36, %41 : vector<1x512xf32>
    %c0_31 = arith.constant 0 : index
    %c2_32 = arith.constant 2 : index
    %c0_33 = arith.constant 0 : index
    %43 = vector.load %arg2[%c0_31, %c2_32, %c0_33] : memref<1x4x512xf32, #tpu.memory_space<vmem>>, vector<1x1x512xf32>
    %44 = vector.shape_cast %43 : vector<1x1x512xf32> to vector<1x512xf32>
    %c1_34 = arith.constant 1 : index
    %c2_35 = arith.constant 2 : index
    %45 = memref.load %arg3[%c1_34, %c2_35] : memref<3x4xf32, #tpu.memory_space<smem>>
    %46 = vector.broadcast %45 : f32 to vector<1x512xf32>
    %47 = arith.mulf %44, %46 : vector<1x512xf32>
    %48 = arith.addf %42, %47 : vector<1x512xf32>
    %c0_36 = arith.constant 0 : index
    %c3_37 = arith.constant 3 : index
    %c0_38 = arith.constant 0 : index
    %49 = vector.load %arg2[%c0_36, %c3_37, %c0_38] : memref<1x4x512xf32, #tpu.memory_space<vmem>>, vector<1x1x512xf32>
    %50 = vector.shape_cast %49 : vector<1x1x512xf32> to vector<1x512xf32>
    %c1_39 = arith.constant 1 : index
    %c3_40 = arith.constant 3 : index
    %51 = memref.load %arg3[%c1_39, %c3_40] : memref<3x4xf32, #tpu.memory_space<smem>>
    %52 = vector.broadcast %51 : f32 to vector<1x512xf32>
    %53 = arith.mulf %50, %52 : vector<1x512xf32>
    %54 = arith.addf %48, %53 : vector<1x512xf32>
    %c0_41 = arith.constant 0 : index
    %c1_42 = arith.constant 1 : index
    %c0_43 = arith.constant 0 : index
    %55 = vector.load %arg5[%c0_41, %c1_42, %c0_43] : memref<1x3x512xf32, #tpu.memory_space<vmem>>, vector<1x1x512xf32>
    %56 = vector.shape_cast %55 : vector<1x1x512xf32> to vector<1x512xf32>
    %57 = vector.shape_cast %54 : vector<1x512xf32> to vector<1x1x512xf32>
    tpu.vector_store %arg5[%c0_41, %c1_42, %c0_43], %57 {strides = array<i32>} : memref<1x3x512xf32, #tpu.memory_space<vmem>>, vector<1x1x512xf32>,
    %c0_44 = arith.constant 0 : index
    %c0_45 = arith.constant 0 : index
    %c0_46 = arith.constant 0 : index
    %58 = vector.load %arg2[%c0_44, %c0_45, %c0_46] : memref<1x4x512xf32, #tpu.memory_space<vmem>>, vector<1x1x512xf32>
    %59 = vector.shape_cast %58 : vector<1x1x512xf32> to vector<1x512xf32>
    %c2_47 = arith.constant 2 : index
    %c0_48 = arith.constant 0 : index
    %60 = memref.load %arg3[%c2_47, %c0_48] : memref<3x4xf32, #tpu.memory_space<smem>>
    %61 = vector.broadcast %60 : f32 to vector<1x512xf32>
    %62 = arith.mulf %59, %61 : vector<1x512xf32>
    %c2_49 = arith.constant 2 : index
    %63 = memref.load %arg4[%c2_49] : memref<3xf32, #tpu.memory_space<smem>>
    %64 = vector.broadcast %63 : f32 to vector<1x512xf32>
    %65 = arith.addf %62, %64 : vector<1x512xf32>
    %c0_50 = arith.constant 0 : index
    %c1_51 = arith.constant 1 : index
    %c0_52 = arith.constant 0 : index
    %66 = vector.load %arg2[%c0_50, %c1_51, %c0_52] : memref<1x4x512xf32, #tpu.memory_space<vmem>>, vector<1x1x512xf32>
    %67 = vector.shape_cast %66 : vector<1x1x512xf32> to vector<1x512xf32>
    %c2_53 = arith.constant 2 : index
    %c1_54 = arith.constant 1 : index
    %68 = memref.load %arg3[%c2_53, %c1_54] : memref<3x4xf32, #tpu.memory_space<smem>>
    %69 = vector.broadcast %68 : f32 to vector<1x512xf32>
    %70 = arith.mulf %67, %69 : vector<1x512xf32>
    %71 = arith.addf %65, %70 : vector<1x512xf32>
    %c0_55 = arith.constant 0 : index
    %c2_56 = arith.constant 2 : index
    %c0_57 = arith.constant 0 : index
    %72 = vector.load %arg2[%c0_55, %c2_56, %c0_57] : memref<1x4x512xf32, #tpu.memory_space<vmem>>, vector<1x1x512xf32>
    %73 = vector.shape_cast %72 : vector<1x1x512xf32> to vector<1x512xf32>
    %c2_58 = arith.constant 2 : index
    %c2_59 = arith.constant 2 : index
    %74 = memref.load %arg3[%c2_58, %c2_59] : memref<3x4xf32, #tpu.memory_space<smem>>
    %75 = vector.broadcast %74 : f32 to vector<1x512xf32>
    %76 = arith.mulf %73, %75 : vector<1x512xf32>
    %77 = arith.addf %71, %76 : vector<1x512xf32>
    %c0_60 = arith.constant 0 : index
    %c3_61 = arith.constant 3 : index
    %c0_62 = arith.constant 0 : index
    %78 = vector.load %arg2[%c0_60, %c3_61, %c0_62] : memref<1x4x512xf32, #tpu.memory_space<vmem>>, vector<1x1x512xf32>
    %79 = vector.shape_cast %78 : vector<1x1x512xf32> to vector<1x512xf32>
    %c2_63 = arith.constant 2 : index
    %c3_64 = arith.constant 3 : index
    %80 = memref.load %arg3[%c2_63, %c3_64] : memref<3x4xf32, #tpu.memory_space<smem>>
    %81 = vector.broadcast %80 : f32 to vector<1x512xf32>
    %82 = arith.mulf %79, %81 : vector<1x512xf32>
    %83 = arith.addf %77, %82 : vector<1x512xf32>
    %c0_65 = arith.constant 0 : index
    %c2_66 = arith.constant 2 : index
    %c0_67 = arith.constant 0 : index
    %84 = vector.load %arg5[%c0_65, %c2_66, %c0_67] : memref<1x3x512xf32, #tpu.memory_space<vmem>>, vector<1x1x512xf32>
    %85 = vector.shape_cast %84 : vector<1x1x512xf32> to vector<1x512xf32>
    %86 = vector.shape_cast %83 : vector<1x512xf32> to vector<1x1x512xf32>
    tpu.vector_store %arg5[%c0_65, %c2_66, %c0_67], %86 {strides = array<i32>} : memref<1x3x512xf32, #tpu.memory_space<vmem>>, vector<1x1x512xf32>,
    return
  }
  func.func @transform_0(%arg0: i32, %arg1: i32) -> (i32, i32, i32) {
    %c0_i32 = arith.constant 0 : i32
    %c0_i32_0 = arith.constant 0 : i32
    return %arg0, %c0_i32, %arg1 : i32, i32, i32
  }
  func.func @transform_1(%arg0: i32, %arg1: i32) -> (i32, i32) {
    %c0_i32 = arith.constant 0 : i32
    %c0_i32_0 = arith.constant 0 : i32
    %c0_i32_1 = arith.constant 0 : i32
    return %c0_i32, %c0_i32_0 : i32, i32
  }
  func.func @transform_2(%arg0: i32, %arg1: i32) -> i32 {
    %c0_i32 = arith.constant 0 : i32
    %c0_i32_0 = arith.constant 0 : i32
    return %c0_i32 : i32
  }
  func.func @transform_3(%arg0: i32, %arg1: i32) -> (i32, i32, i32) {
    %c0_i32 = arith.constant 0 : i32
    %c0_i32_0 = arith.constant 0 : i32
    return %arg0, %c0_i32, %arg1 : i32, i32, i32
  }
}

</mosaic_0001>

<llo_original>
// kernel: tpu_custom_call.1
$region0: #{tpu_custom_call.1}
  #allocation0 [shape = 'u32[]', space=smem, size = 0x4, offset = 0x4, fixed_abs, tag = 'smem constant byte address 0x4 - core index']
  #allocation1 [shape = 'u32[144,128]{1,0:T(1,128)}', space=vmem, size = 0x12000, scoped, tag = 'internal scratch']
  %s0 = inlined_call_operand.hbm [shape: f32[2,4,512], index: 0, kind: input, shape index: {}]
  %s1 = inlined_call_operand.hbm [shape: f32[3,4], index: 1, kind: input, shape index: {}]
  %s2 = inlined_call_operand.vmem [shape: f32[3], index: 2, kind: input, shape index: {}]
  %s3 = inlined_call_operand.vmem [shape: f32[2,3,512], index: 3, kind: output, shape index: {}]
  %s4 = sld [smem:[#allocation0]]
  $region57: #{tpu_custom_call.1} parent=0
    _
  %s6 = ssub.s32 1, %s4
  %s7 = scalar_select 0, %s6, %s4
  $region1: #{tpu_custom_call.1} parent=0
    #allocation2 [shape = 'u8[16384]{0}', space=vmem, size = 0x4000, scoped, tag = 'input window, operand 0']
    #allocation3 [shape = 's32[2]{0}', space=sflag, size = 0x8, scoped, tag = 'scoped memory for tpu_custom_call.1']
    #allocation4 [shape = 's32[2]{0}', space=sflag, size = 0x8, scoped, tag = 'scoped memory for tpu_custom_call.1']
    #allocation5 [shape = 's32[2]{0}', space=sflag, size = 0x8, scoped, tag = 'scoped memory for tpu_custom_call.1']
    #allocation6 [shape = 'u8[2048]{0}', space=smem, size = 0x800, scoped, tag = 'input window, operand 1, single buffered']
    #allocation7 [shape = 'u8[512]{0}', space=smem, size = 0x200, scoped, tag = 'input window, operand 2, single buffered']
    %8 = vsyncpa [#allocation3], 0
    %s9 = scalar_lea.sflag [#allocation3], 1
    %10 = vsyncpa %s9, 0
    %11 = vsyncpa [#allocation4], 0
    %12 = vsyncpa [#allocation5], 0
    loop: start=0, step=1, limit=4
    $region2: #{tpu_custom_call.1} parent=1 // loop_pre_header
      _
    $region3: #{tpu_custom_call.1} parent=1 // loop_header
      %s14 = sphi 0, %s18
      %p15 = scmp.ge.s32.totalorder %s14, 4
      %s21 = sphi 0, %s33
      %s22 = sphi 0, %s29
      %s23 = sphi 0, %s21
      %s24 = sphi 0, %s22
      %s25 = sphi 0, %s23
      %s26 = sphi 0, %s24
      %s38 = sphi 0, %s40
      %s41 = sphi 0, %s38
      %s42 = sphi 0, %s41
      %s58 = sphi 0, %s42
      %s62 = sphi 0, %s62
      %s64 = sphi 0, %s62
      %s65 = sphi 0, %s64
      %s79 = sphi 0, %s65
      %s83 = sphi 0, %s83
      %s85 = sphi 0, %s83
      %s86 = sphi 0, %s85
      %s100 = sphi 0, %s86
      %s108 = sphi 0, %s110
      %s111 = sphi 0, %s108
      %s112 = sphi 0, %s111
      %s128 = sphi 0, %s112
    $region4: #{tpu_custom_call.1} parent=1 // loop_header_branch
      %17 = sbr.rel (%p15) target = $region8
    $region5: #{tpu_custom_call.1} parent=1 // loop_body
      %s19 = ssub.s32 %s14, 1
      %s20 = ssub.s32 %s14, 2
      %s27 = sadd.s32 1, %s22
      %p28 = scmp.ge.s32.totalorder %s27, 1
      %s29 = scalar_select %p28, 0, %s27
      %s30 = sadd.s32 1, %s21
      %s31 = scalar_select %p28, %s30, %s21
      %p32 = scmp.ge.s32.totalorder %s31, 2
      %s33 = scalar_select %p32, 0, %s31
      %s34 = ssub.s32 %s21, %s33
      %s35 = ssub.s32 %s22, %s29
      %s36 = sor.u32 %s34, %s35
      %p37 = scmp.eq.s32.totalorder %s36, 0
      %s39 = sadd.s32 %s38, 1
      %s40 = scalar_select %p37, %s38, %s39
      %p43 = pneg %p37
      %p44 = scmp.eq.s32.totalorder %s14, 1
      %p45 = por %p43, %p44
      %p46 = scmp.ne.s32.totalorder %s38, %s41
      %p47 = scmp.eq.s32.totalorder %s14, 0
      %p48 = por %p46, %p47
      %p49 = scmp.ne.s32.totalorder %s38, %s41
      %p50 = scmp.eq.s32.totalorder %s19, 1
      %p51 = por %p49, %p50
      %p52 = scmp.ne.s32.totalorder %s41, %s42
      %p53 = scmp.eq.s32.totalorder %s19, 0
      %p54 = por %p52, %p53
      %p55 = scmp.ne.s32.totalorder %s41, %s42
      %p56 = scmp.eq.s32.totalorder %s20, 1
      %p57 = por %p55, %p56
      %p59 = scmp.ne.s32.totalorder %s42, %s58
      %p60 = scmp.eq.s32.totalorder %s20, 0
      %p61 = por %p59, %p60
      %s63 = sadd.s32 %s62, 1
      %p66 = scmp.eq.s32.totalorder %s14, 1
      %p67 = scmp.ne.s32.totalorder %s62, %s64
      %p68 = scmp.eq.s32.totalorder %s14, 0
      %p69 = por %p67, %p68
      %p70 = scmp.ne.s32.totalorder %s62, %s64
      %p71 = scmp.eq.s32.totalorder %s19, 1
      %p72 = por %p70, %p71
      %p73 = scmp.ne.s32.totalorder %s64, %s65
      %p74 = scmp.eq.s32.totalorder %s19, 0
      %p75 = por %p73, %p74
      %p76 = scmp.ne.s32.totalorder %s64, %s65
      %p77 = scmp.eq.s32.totalorder %s20, 1
      %p78 = por %p76, %p77
      %p80 = scmp.ne.s32.totalorder %s65, %s79
      %p81 = scmp.eq.s32.totalorder %s20, 0
      %p82 = por %p80, %p81
      %s84 = sadd.s32 %s83, 1
      %p87 = scmp.eq.s32.totalorder %s14, 1
      %p88 = scmp.ne.s32.totalorder %s83, %s85
      %p89 = scmp.eq.s32.totalorder %s14, 0
      %p90 = por %p88, %p89
      %p91 = scmp.ne.s32.totalorder %s83, %s85
      %p92 = scmp.eq.s32.totalorder %s19, 1
      %p93 = por %p91, %p92
      %p94 = scmp.ne.s32.totalorder %s85, %s86
      %p95 = scmp.eq.s32.totalorder %s19, 0
      %p96 = por %p94, %p95
      %p97 = scmp.ne.s32.totalorder %s85, %s86
      %p98 = scmp.eq.s32.totalorder %s20, 1
      %p99 = por %p97, %p98
      %p101 = scmp.ne.s32.totalorder %s86, %s100
      %p102 = scmp.eq.s32.totalorder %s20, 0
      %p103 = por %p101, %p102
      %s104 = ssub.s32 %s21, %s33
      %s105 = ssub.s32 %s22, %s29
      %s106 = sor.u32 %s104, %s105
      %p107 = scmp.eq.s32.totalorder %s106, 0
      %s109 = sadd.s32 %s108, 1
      %s110 = scalar_select %p107, %s108, %s109
      %p113 = pneg %p107
      %p114 = scmp.eq.s32.totalorder %s14, 1
      %p115 = por %p113, %p114
      %p116 = scmp.ne.s32.totalorder %s108, %s111
      %p117 = scmp.eq.s32.totalorder %s14, 0
      %p118 = por %p116, %p117
      %p119 = scmp.ne.s32.totalorder %s108, %s111
      %p120 = scmp.eq.s32.totalorder %s19, 1
      %p121 = por %p119, %p120
      %p122 = scmp.ne.s32.totalorder %s111, %s112
      %p123 = scmp.eq.s32.totalorder %s19, 0
      %p124 = por %p122, %p123
      %p125 = scmp.ne.s32.totalorder %s111, %s112
      %p126 = scmp.eq.s32.totalorder %s20, 1
      %p127 = por %p125, %p126
      %p129 = scmp.ne.s32.totalorder %s112, %s128
      %p130 = scmp.eq.s32.totalorder %s20, 0
      %p131 = por %p129, %p130
      %p132 = scmp.le.s32.totalorder 1, %s14
      %p133 = scmp.lt.s32.totalorder %s14, 3
      %p134 = pnand %p132, %p133
      %p135 = pneg %p134
      // Predicated region
      $region9: #{tpu_custom_call.1} parent=5 // pred_check
        _
      $region10: #{tpu_custom_call.1} parent=5 // pred_check_branch
        %137 = sbr.rel (%p134) target = $region12
      $region11: #{tpu_custom_call.1} parent=5 // pred_region
        %s138 = ssub.s32 %s14, 1
        // Predicated region
        $region13: #{tpu_custom_call.1} parent=11 // pred_check
          %p139 = pneg %p75
        $region14: #{tpu_custom_call.1} parent=11 // pred_check_branch
          %141 = sbr.rel (%p139) target = $region16
        $region15: #{tpu_custom_call.1} parent=11 // pred_region
          %s143 = ssub.s32 64, 64
          %144 = vsyncadd [#allocation4], %s143
          %147 = dma.hbm_to_smem %s1, 64, [#allocation6], [#allocation4]
        $region16: #{tpu_custom_call.1} parent=11 // pred_fallthru
          _
        // Predicated region
        $region17: #{tpu_custom_call.1} parent=11 // pred_check
          %p148 = pneg %p96
        $region18: #{tpu_custom_call.1} parent=11 // pred_check_branch
          %150 = sbr.rel (%p148) target = $region20
        $region19: #{tpu_custom_call.1} parent=11 // pred_region
          %s152 = ssub.s32 16, 16
          %153 = vsyncadd [#allocation5], %s152
          %s155 = sshll.u32 %s2, 4
          %s156 = int_to_ptr.vmem [resolvable:$true] %s155
          %158 = dma.vmem_to_smem %s156, 16, [#allocation7], [#allocation5]
        $region20: #{tpu_custom_call.1} parent=11 // pred_fallthru
          _
      $region12: #{tpu_custom_call.1} parent=5 // pred_fallthru
        _
      %p159 = scmp.lt.s32.totalorder %s14, 2
      // Predicated region
      $region21: #{tpu_custom_call.1} parent=5 // pred_check
        %p160 = pneg %p159
      $region22: #{tpu_custom_call.1} parent=5 // pred_check_branch
        %162 = sbr.rel (%p160) target = $region24
      $region23: #{tpu_custom_call.1} parent=5 // pred_region
        // Predicated region
        $region25: #{tpu_custom_call.1} parent=23 // pred_check
          %p163 = pneg %p48
        $region26: #{tpu_custom_call.1} parent=23 // pred_check_branch
          %165 = sbr.rel (%p163) target = $region28
        $region27: #{tpu_custom_call.1} parent=23 // pred_region
          %s166 = sand.u32 %s38, 1
          %s167 = scalar_lea.sflag [#allocation3], %s166
          %s168 = sand.u32 %s38, 1
          %s169 = smul.addr %s168, 16
          %s170 = scalar_lea.vmem [#allocation2], %s169
          %s171 = smul.u32 4, %s22
          %s173 = ssub.s32 256, 256
          %174 = vsyncadd %s167, %s173
          %s175 = smul.addr %s21, 4
          %s176 = sadd.s32 %s171, %s175
          %s177 = smul.addr %s176, 64
          %s178 = scalar_lea.hbm %s0, %s177
          %s180 = sshll.u32 %s170, 4
          %s181 = int_to_ptr.vmem [resolvable:$true] %s180
          %183 = dma.hbm_to_vmem [thread:$0]  %s178, 256, %s181, %s167
        $region28: #{tpu_custom_call.1} parent=23 // pred_fallthru
          _
      $region24: #{tpu_custom_call.1} parent=5 // pred_fallthru
        _
      %p184 = scmp.le.s32.totalorder 1, %s14
      %p185 = scmp.lt.s32.totalorder %s14, 3
      %p186 = pnand %p184, %p185
      %p187 = pneg %p186
      // Predicated region
      $region29: #{tpu_custom_call.1} parent=5 // pred_check
        _
      $region30: #{tpu_custom_call.1} parent=5 // pred_check_branch
        %189 = sbr.rel (%p186) target = $region32
      $region31: #{tpu_custom_call.1} parent=5 // pred_region
        %s190 = ssub.s32 %s14, 1
        %s191 = sand.u32 %s41, 1
        %s192 = scalar_lea.sflag [#allocation3], %s191
        %s193 = sand.u32 %s41, 1
        %s194 = smul.addr %s193, 16
        %s195 = scalar_lea.vmem [#allocation2], %s194
        // Predicated region
        $region33: #{tpu_custom_call.1} parent=31 // pred_check
          %p196 = pneg %p54
        $region34: #{tpu_custom_call.1} parent=31 // pred_check_branch
          %198 = sbr.rel (%p196) target = $region36
        $region35: #{tpu_custom_call.1} parent=31 // pred_region
          %199 = dma.done %s192, 256
        $region36: #{tpu_custom_call.1} parent=31 // pred_fallthru
          _
        // Predicated region
        $region37: #{tpu_custom_call.1} parent=31 // pred_check
          %p200 = pneg %p75
        $region38: #{tpu_custom_call.1} parent=31 // pred_check_branch
          %202 = sbr.rel (%p200) target = $region40
        $region39: #{tpu_custom_call.1} parent=31 // pred_region
          %203 = dma.done [#allocation4], 64
        $region40: #{tpu_custom_call.1} parent=31 // pred_fallthru
          _
        // Predicated region
        $region41: #{tpu_custom_call.1} parent=31 // pred_check
          %p204 = pneg %p96
        $region42: #{tpu_custom_call.1} parent=31 // pred_check_branch
          %206 = sbr.rel (%p204) target = $region44
        $region43: #{tpu_custom_call.1} parent=31 // pred_region
          %207 = dma.done [#allocation5], 16
        $region44: #{tpu_custom_call.1} parent=31 // pred_fallthru
          _
        %208 = sfence
        %s209 = sand.u32 %s41, 1
        %s210 = scalar_lea.sflag [#allocation3], %s209
        %s211 = sand.u32 %s41, 1
        %s212 = smul.addr %s211, 16
        %s213 = scalar_lea.vmem [#allocation2], %s212
        %p214 = pneg %p54
        %p215 = pneg %p51
        %p216 = pneg %p75
        %p217 = pneg %p72
        %p218 = pneg %p96
        %p219 = pneg %p93
        %p220 = pneg %p124
        %p221 = pneg %p121
        %s222 = smul.u32 4, %s24
        %p223 = scmp.lt.s32.totalorder %s23, 1
        %s224 = scalar_select %p223, %s23, 1
        %p225 = scmp.lt.s32.totalorder %s222, 3
        %s226 = scalar_select %p225, %s222, 3
        %s227 = smul.addr %s224, 4
        %s228 = sadd.s32 %s226, %s227
        %s229 = smul.addr %s228, 4
        %s230 = scalar_lea.vmem %s3, %s229
        %s231 = smul.u32 4, %s24
        %s232 = smul.u32 4, %s24
        %p233 = scmp.lt.s32.totalorder %s23, 1
        %s234 = scalar_select %p233, %s23, 1
        %p235 = scmp.lt.s32.totalorder %s232, 3
        %s236 = scalar_select %p235, %s232, 3
        %s237 = smul.addr %s234, 4
        %s238 = sadd.s32 %s236, %s237
        %s239 = smul.addr %s238, 4
        %s240 = scalar_lea.vmem %s3, %s239
        %s241 = smul.u32 4, %s24
        %v242 = vld [vmem:[%s195] ss:$4 sm:$0xf]
        %s243 = sld [smem:[#allocation6]]
        %v244 = vstv %s243
        %v245 = vmul.f32 %v242, %v244
        %s246 = sld [smem:[#allocation7]]
        %v247 = vstv %s246
        %v248 = vadd.f32 %v245, %v247
        %s249 = scalar_lea.vmem %s195, 1 [#allocation2]
        %v250 = vld [vmem:[%s249] ss:$4 sm:$0xf]
        %s251 = sld [smem:[#allocation6 + $0x1]]
        %v252 = vstv %s251
        %v253 = vmul.f32 %v250, %v252
        %v254 = vadd.f32 %v248, %v253
        %s255 = scalar_lea.vmem %s195, 2 [#allocation2]
        %v256 = vld [vmem:[%s255] ss:$4 sm:$0xf]
        %s257 = sld [smem:[#allocation6 + $0x2]]
        %v258 = vstv %s257
        %v259 = vmul.f32 %v256, %v258
        %v260 = vadd.f32 %v254, %v259
        %s261 = scalar_lea.vmem %s195, 3 [#allocation2]
        %v262 = vld [vmem:[%s261] ss:$4 sm:$0xf]
        %s263 = sld [smem:[#allocation6 + $0x3]]
        %v264 = vstv %s263
        %v265 = vmul.f32 %v262, %v264
        %v266 = vadd.f32 %v260, %v265
        %v267 = vlaneseq
        %vm268 = vcmp.ge.s32.totalorder %v267, 0
        %vm269 = vcmp.lt.s32.totalorder %v267, 512
        %vm270 = vmand %vm268, %vm269
        %271 = vst.msk [vmem:[%s240] ss:$4 sm:$0xf] %vm270, %v266
        %v272 = vld [vmem:[%s195] ss:$4 sm:$0xf]
        %s273 = sld [smem:[#allocation6 + $0x80]]
        %v274 = vstv %s273
        %v275 = vmul.f32 %v272, %v274
        %s276 = sld [smem:[#allocation7 + $0x1]]
        %v277 = vstv %s276
        %v278 = vadd.f32 %v275, %v277
        %v279 = vld [vmem:[%s249] ss:$4 sm:$0xf]
        %s280 = sld [smem:[#allocation6 + $0x81]]
        %v281 = vstv %s280
        %v282 = vmul.f32 %v279, %v281
        %v283 = vadd.f32 %v278, %v282
        %v284 = vld [vmem:[%s255] ss:$4 sm:$0xf]
        %s285 = sld [smem:[#allocation6 + $0x82]]
        %v286 = vstv %s285
        %v287 = vmul.f32 %v284, %v286
        %v288 = vadd.f32 %v283, %v287
        %v289 = vld [vmem:[%s261] ss:$4 sm:$0xf]
        %s290 = sld [smem:[#allocation6 + $0x83]]
        %v291 = vstv %s290
        %v292 = vmul.f32 %v289, %v291
        %v293 = vadd.f32 %v288, %v292
        %s294 = scalar_lea.vmem %s240, 1
        %295 = vst.msk [vmem:[%s294] ss:$4 sm:$0xf] %vm270, %v293
        %v296 = vld [vmem:[%s195] ss:$4 sm:$0xf]
        %s297 = sld [smem:[#allocation6 + $0x100]]
        %v298 = vstv %s297
        %v299 = vmul.f32 %v296, %v298
        %s300 = sld [smem:[#allocation7 + $0x2]]
        %v301 = vstv %s300
        %v302 = vadd.f32 %v299, %v301
        %v303 = vld [vmem:[%s249] ss:$4 sm:$0xf]
        %s304 = sld [smem:[#allocation6 + $0x101]]
        %v305 = vstv %s304
        %v306 = vmul.f32 %v303, %v305
        %v307 = vadd.f32 %v302, %v306
        %v308 = vld [vmem:[%s255] ss:$4 sm:$0xf]
        %s309 = sld [smem:[#allocation6 + $0x102]]
        %v310 = vstv %s309
        %v311 = vmul.f32 %v308, %v310
        %v312 = vadd.f32 %v307, %v311
        %v313 = vld [vmem:[%s261] ss:$4 sm:$0xf]
        %s314 = sld [smem:[#allocation6 + $0x103]]
        %v315 = vstv %s314
        %v316 = vmul.f32 %v313, %v315
        %v317 = vadd.f32 %v312, %v316
        %s318 = scalar_lea.vmem %s240, 2
        %319 = vst.msk [vmem:[%s318] ss:$4 sm:$0xf] %vm270, %v317
        %s320 = smul.u32 4, %s24
        %p321 = scmp.lt.s32.totalorder %s23, 1
        %s322 = scalar_select %p321, %s23, 1
        %p323 = scmp.lt.s32.totalorder %s320, 3
        %s324 = scalar_select %p323, %s320, 3
        %s325 = smul.addr %s322, 4
        %s326 = sadd.s32 %s324, %s325
        %s327 = smul.addr %s326, 4
        %s328 = scalar_lea.vmem %s3, %s327
        // Predicated region
        $region45: #{tpu_custom_call.1} parent=31 // pred_check
          %p329 = pneg %p121
        $region46: #{tpu_custom_call.1} parent=31 // pred_check_branch
          %331 = sbr.rel (%p329) target = $region48
        $region47: #{tpu_custom_call.1} parent=31 // pred_region
          %s332 = smul.u32 4, %s24
        $region48: #{tpu_custom_call.1} parent=31 // pred_fallthru
          _
      $region32: #{tpu_custom_call.1} parent=5 // pred_fallthru
        _
      %p333 = scmp.le.s32.totalorder 2, %s14
      // Predicated region
      $region49: #{tpu_custom_call.1} parent=5 // pred_check
        %p334 = pneg %p333
      $region50: #{tpu_custom_call.1} parent=5 // pred_check_branch
        %336 = sbr.rel (%p334) target = $region52
      $region51: #{tpu_custom_call.1} parent=5 // pred_region
        %s337 = ssub.s32 %s14, 2
        // Predicated region
        $region53: #{tpu_custom_call.1} parent=51 // pred_check
          %p338 = pneg %p127
        $region54: #{tpu_custom_call.1} parent=51 // pred_check_branch
          %340 = sbr.rel (%p338) target = $region56
        $region55: #{tpu_custom_call.1} parent=51 // pred_region
          %s341 = smul.u32 4, %s26
          %p342 = scmp.lt.s32.totalorder %s25, 1
          %s343 = scalar_select %p342, %s25, 1
          %p344 = scmp.lt.s32.totalorder %s341, 3
          %s345 = scalar_select %p344, %s341, 3
          %s346 = smul.addr %s343, 4
          %s347 = sadd.s32 %s345, %s346
          %s348 = smul.addr %s347, 4
          %s349 = scalar_lea.vmem %s3, %s348
        $region56: #{tpu_custom_call.1} parent=51 // pred_fallthru
          _
      $region52: #{tpu_custom_call.1} parent=5 // pred_fallthru
        _
    $region6: #{tpu_custom_call.1} parent=1 // loop_footer
      %s18 = sadd.s32 1, %s14
    $region7: #{tpu_custom_call.1} parent=1 // loop_footer_branch
      %13 = sbr.rel target = $region3
    $region8: #{tpu_custom_call.1} parent=1 // loop_exit
      _
    %350 = vsyncpa [#allocation3], 1
    %s351 = scalar_lea.sflag [#allocation3], 1
    %352 = vsyncpa %s351, 1
    %353 = vsyncpa [#allocation4], 1
    %s354 = scalar_lea.sflag [#allocation4], 1
    %355 = vsyncpa %s354, 1
    %356 = vsyncpa [#allocation5], 1
    %s357 = scalar_lea.sflag [#allocation5], 1
    %358 = vsyncpa %s357, 1

</llo_original>
